<compile_context>
chip_gen: v7x
topology: tpu7x:2x2x1
jax: 0.10.0
libtpu: 0.0.40
codegen_flags: <defaults>
</compile_context>

<pallas_src>
import functools
import math

import jax
import jax.numpy as jnp
from jax.experimental import pallas as pl
from jax.experimental.pallas import tpu as pltpu


def _round_up(x: int, m: int) -> int:
    return ((x + m - 1) // m) * m


def _fused_mlp_kernel(*refs, num_layers: int):
    """refs = (x_ref, w1_ref, b1_ref, ..., wL_ref, bL_ref, o_ref).

    Computes x @ W1 + b1 -> ReLU -> ... -> @ WL + bL (no ReLU on last layer),
    entirely in VMEM / vregs.  Matmuls accumulate in f32 on the MXU; bias add,
    ReLU and the final cast are f32 VPU epilogue work fused with the store.
    """
    x_ref, o_ref = refs[0], refs[-1]
    compute_dtype = x_ref.dtype
    h = x_ref[...]
    for l in range(num_layers):
        w_ref = refs[1 + 2 * l]
        b_ref = refs[2 + 2 * l]
        y = jnp.dot(h, w_ref[...], preferred_element_type=jnp.float32)
        y = y + b_ref[...]                 # bias broadcast over rows (f32)
        if l != num_layers - 1:
            y = jnp.maximum(y, 0.0)        # ReLU in f32 (don't regress on v5e)
            h = y.astype(compute_dtype)    # feed next MXU pass in compute dtype
        else:
            h = y
    o_ref[...] = h.astype(o_ref.dtype)


def prepare_mlp_params(params, compute_dtype=jnp.bfloat16):
    """One-time parameter prep (hoisted out of the per-call forward).

    Casts weights to the compute dtype and biases to f32 row-vectors [1, d_out].
    """
    prepped = []
    for (w, b) in params:
        prepped.append((jnp.asarray(w, compute_dtype),
                        jnp.asarray(b, jnp.float32).reshape(1, -1)))
    return prepped


def mlp_forward(x, prepped_params, *, tile_m=None, out_dtype=None):
    """Fused MLP forward: ReLU after every layer except the last (bn=False).

    x:               [N, input_dim]
    prepped_params:  output of prepare_mlp_params (W [d_in, d_out], b [1, d_out]).
    """
    n, d_in = x.shape
    num_layers = len(prepped_params)
    dims = [d_in] + [w.shape[1] for (w, _) in prepped_params]
    assert prepped_params[0][0].shape[0] == d_in
    compute_dtype = prepped_params[0][0].dtype
    out_dtype = x.dtype if out_dtype is None else out_dtype

    x_c = x.astype(compute_dtype)  # no-op if caller already supplies compute dtype

    # --- batch tiling: big 8-aligned tiles, but >=2 grid steps for v7x dual-TC ---
    if tile_m is None:
        if n <= 16:
            tile_m = _round_up(n, 8)
        else:
            target = min(2048, _round_up(n, 256))   # approach HBM roofline
            half = _round_up(-(-n // 2), 8)         # keep >=2 grid steps
            tile_m = max(8, min(target, half))
    tile_m = _round_up(tile_m, 8)
    grid_m = -(-n // tile_m)                        # cdiv
    n_pad = grid_m * tile_m

    xp = jnp.pad(x_c, ((0, n_pad - n), (0, 0))) if n_pad != n else x_c

    flat_params = []
    for (w, b) in prepped_params:
        flat_params += [w, b]

    # --- BlockSpecs: x / out tiled over batch at REAL feature widths (no HBM
    #     lane padding); weights & biases fully VMEM-resident (constant index) ---
    in_specs = [pl.BlockSpec((tile_m, d_in), lambda i: (i, 0))]
    for l in range(num_layers):
        in_specs.append(pl.BlockSpec((dims[l], dims[l + 1]), lambda i: (0, 0)))
        in_specs.append(pl.BlockSpec((1, dims[l + 1]), lambda i: (0, 0)))
    out_spec = pl.BlockSpec((tile_m, dims[-1]), lambda i: (i, 0))
    # TODO(synk): weight/bias specs could use pipeline_mode=pl.Buffered(1) to halve
    # resident-weight VMEM; irrelevant at these toy widths, decisive only at 2048+.

    # --- generation-aware VMEM budget (on-chip layout pads lanes to 128) ---
    c_item = jnp.dtype(compute_dtype).itemsize
    o_item = jnp.dtype(out_dtype).itemsize
    lanes = [_round_up(d, 128) for d in dims]
    est = 2 * tile_m * lanes[0] * c_item            # x tiles (double buffered)
    est += 2 * tile_m * lanes[-1] * o_item          # out tiles (double buffered)
    for l in range(num_layers):
        est += 2 * lanes[l] * lanes[l + 1] * c_item  # resident weights (+buffers)
        est += 2 * 8 * lanes[l + 1] * 4              # biases (sublane padded, f32)
        est += tile_m * lanes[l + 1] * 4             # live f32 intermediate
    try:
        vmem_cap = int(pltpu.get_tpu_info().vmem_capacity_bytes * 0.8)
    except Exception:
        vmem_cap = 48 * 1024 * 1024   # safe headroom under v7x's 64 MiB physical
    vmem_limit = int(min(vmem_cap, max(2 * est, 4 * 1024 * 1024)))
    # TODO(synk): if resident weights ever exceed the VMEM cap (e.g. 4096x4096 f32
    # on v7x), add a K-reduction grid axis ("arbitrary") with a pl.when-initialized
    # f32 accumulator instead of whole-matrix residency.

    flops = 2 * n_pad * sum(dims[l] * dims[l + 1] for l in range(num_layers))
    bytes_accessed = (
        n_pad * d_in * c_item
        + n_pad * dims[-1] * o_item
        + sum(int(w.size) * c_item + int(b.size) * 4 for (w, b) in prepped_params)
    )

    kernel = functools.partial(_fused_mlp_kernel, num_layers=num_layers)

    out_pad = pl.pallas_call(
        kernel,
        out_shape=jax.ShapeDtypeStruct((n_pad, dims[-1]), out_dtype),
        grid_spec=pltpu.PrefetchScalarGridSpec(
            num_scalar_prefetch=0,
            grid=(grid_m,),
            in_specs=in_specs,
            out_specs=out_spec,
        ),
        compiler_params=pltpu.CompilerParams(
            dimension_semantics=("parallel",),
            vmem_limit_bytes=vmem_limit,
        ),
        cost_estimate=pl.CostEstimate(
            flops=flops, transcendentals=0, bytes_accessed=bytes_accessed),
    )(xp, *flat_params)

    return out_pad[:n] if n_pad != n else out_pad


def init_mlp_params(key, input_dim, output_dim, num_hidden_lyr=2,
                    hidden_channels=None, dtype=jnp.float32):
    """Xavier-normal weights (gain = calculate_gain('relu') = sqrt(2)) mirroring
    MLP.weight_init; biases use PyTorch Linear default U(-1/sqrt(fan_in), +)."""
    if not hidden_channels:
        hidden_channels = [input_dim for _ in range(num_hidden_lyr)]
    layer_channels = [input_dim] + hidden_channels + [output_dim]
    gain = math.sqrt(2.0)
    params = []
    for i in range(len(layer_channels) - 1):
        fan_in, fan_out = layer_channels[i], layer_channels[i + 1]
        key, wk, bk = jax.random.split(key, 3)
        std = gain * math.sqrt(2.0 / (fan_in + fan_out))
        w = std * jax.random.normal(wk, (fan_in, fan_out), dtype=dtype)  # [in, out]
        bound = 1.0 / math.sqrt(fan_in)
        b = jax.random.uniform(bk, (fan_out,), dtype=dtype,
                               minval=-bound, maxval=bound)
        params.append((w, b))
    return params


def _ref_mlp(x, params):
    h = x
    for i, (w, b) in enumerate(params):
        h = h @ w + b
        if i != len(params) - 1:
            h = jnp.maximum(h, 0.0)
    return h


if __name__ == "__main__":
    key = jax.random.PRNGKey(0)
    batch, input_dim, output_dim = 8, 32, 16

    pkey, xkey, xkey2 = jax.random.split(key, 3)
    params = init_mlp_params(pkey, input_dim, output_dim)

    x = jax.random.normal(xkey, (batch, input_dim), dtype=jnp.float32)

    # ---- strict f32 path (matches the PyTorch module numerics to 1e-5) ----
    params_f32 = prepare_mlp_params(params, compute_dtype=jnp.float32)
    out = jax.block_until_ready(mlp_forward(x, params_f32))
    ref = _ref_mlp(x, params)
    assert out.shape == (batch, output_dim)
    assert jnp.allclose(out, ref, atol=1e-5, rtol=1e-5)

    # ---- f32 path with batch padding + >1 grid step (exercises tiling) ----
    x2 = jax.random.normal(xkey2, (300, input_dim), dtype=jnp.float32)
    out2 = jax.block_until_ready(mlp_forward(x2, params_f32))
    ref2 = _ref_mlp(x2, params)
    assert out2.shape == (300, output_dim)
    assert jnp.allclose(out2, ref2, atol=1e-5, rtol=1e-5)

    # ---- default bf16 compute path (halved HBM traffic; f32 accumulation) ----
    params_bf16 = prepare_mlp_params(params)            # default: bfloat16
    x_bf16 = x.astype(jnp.bfloat16)                      # pass x in bf16, out bf16
    out_bf = jax.block_until_ready(mlp_forward(x_bf16, params_bf16))
    assert out_bf.shape == (batch, output_dim)
    assert jnp.allclose(out_bf.astype(jnp.float32), ref, atol=1e-1, rtol=1e-1)

    print("KERNEL_OK")
</pallas_src>

<mosaic_0001>
module attributes {stable_mosaic.version = 11 : i64} {
  func.func @_fused_mlp_kernel(%arg0: i32, %arg1: memref<8x32xf32, #tpu.memory_space<vmem>>, %arg2: memref<32x32xf32, #tpu.memory_space<vmem>>, %arg3: memref<1x32xf32, #tpu.memory_space<vmem>>, %arg4: memref<32x32xf32, #tpu.memory_space<vmem>>, %arg5: memref<1x32xf32, #tpu.memory_space<vmem>>, %arg6: memref<32x16xf32, #tpu.memory_space<vmem>>, %arg7: memref<1x16xf32, #tpu.memory_space<vmem>>, %arg8: memref<8x16xf32, #tpu.memory_space<vmem>>) attributes {dimension_semantics = [#tpu.dimension_semantics<parallel>], iteration_bounds = array<i64: 1>, scalar_prefetch = 0 : i64, scratch_operands = 0 : i64, tpu.core_type = #tpu.core_type<tc>, window_params = [{transform_indices = @transform_0, window_bounds = array<i64: 8, 32>}, {pipeline_mode = #tpu.pipeline_mode<synchronous>, transform_indices = @transform_1, window_bounds = array<i64: 32, 32>}, {pipeline_mode = #tpu.pipeline_mode<synchronous>, transform_indices = @transform_2, window_bounds = array<i64: 1, 32>}, {pipeline_mode = #tpu.pipeline_mode<synchronous>, transform_indices = @transform_3, window_bounds = array<i64: 32, 32>}, {pipeline_mode = #tpu.pipeline_mode<synchronous>, transform_indices = @transform_4, window_bounds = array<i64: 1, 32>}, {pipeline_mode = #tpu.pipeline_mode<synchronous>, transform_indices = @transform_5, window_bounds = array<i64: 32, 16>}, {pipeline_mode = #tpu.pipeline_mode<synchronous>, transform_indices = @transform_6, window_bounds = array<i64: 1, 16>}, {transform_indices = @transform_7, window_bounds = array<i64: 8, 16>}]} {
    %c0 = arith.constant 0 : index
    %c0_0 = arith.constant 0 : index
    %0 = vector.load %arg1[%c0, %c0_0] : memref<8x32xf32, #tpu.memory_space<vmem>>, vector<8x32xf32>
    %c0_1 = arith.constant 0 : index
    %c0_2 = arith.constant 0 : index
    %1 = vector.load %arg2[%c0_1, %c0_2] : memref<32x32xf32, #tpu.memory_space<vmem>>, vector<32x32xf32>
    %cst = arith.constant dense<0.000000e+00> : vector<8x32xf32>
    %2 = tpu.matmul %0, %1, %cst {dimension_numbers = #tpu.dot_dimension_numbers<[1], [0], [0], [1], [0, 0, 1, 1], [], []>} : vector<8x32xf32>, vector<32x32xf32>, vector<8x32xf32> -> vector<8x32xf32>
    %c0_3 = arith.constant 0 : index
    %c0_4 = arith.constant 0 : index
    %3 = vector.load %arg3[%c0_3, %c0_4] : memref<1x32xf32, #tpu.memory_space<vmem>>, vector<1x32xf32>
    %4 = vector.broadcast %3 : vector<1x32xf32> to vector<8x32xf32>
    %5 = arith.addf %2, %4 : vector<8x32xf32>
    %cst_5 = arith.constant 0.000000e+00 : f32
    %6 = vector.broadcast %cst_5 : f32 to vector<8x32xf32>
    %7 = arith.maximumf %5, %6 : vector<8x32xf32>
    %c0_6 = arith.constant 0 : index
    %c0_7 = arith.constant 0 : index
    %8 = vector.load %arg4[%c0_6, %c0_7] : memref<32x32xf32, #tpu.memory_space<vmem>>, vector<32x32xf32>
    %cst_8 = arith.constant dense<0.000000e+00> : vector<8x32xf32>
    %9 = tpu.matmul %7, %8, %cst_8 {dimension_numbers = #tpu.dot_dimension_numbers<[1], [0], [0], [1], [0, 0, 1, 1], [], []>} : vector<8x32xf32>, vector<32x32xf32>, vector<8x32xf32> -> vector<8x32xf32>
    %c0_9 = arith.constant 0 : index
    %c0_10 = arith.constant 0 : index
    %10 = vector.load %arg5[%c0_9, %c0_10] : memref<1x32xf32, #tpu.memory_space<vmem>>, vector<1x32xf32>
    %11 = vector.broadcast %10 : vector<1x32xf32> to vector<8x32xf32>
    %12 = arith.addf %9, %11 : vector<8x32xf32>
    %cst_11 = arith.constant 0.000000e+00 : f32
    %13 = vector.broadcast %cst_11 : f32 to vector<8x32xf32>
    %14 = arith.maximumf %12, %13 : vector<8x32xf32>
    %c0_12 = arith.constant 0 : index
    %c0_13 = arith.constant 0 : index
    %15 = vector.load %arg6[%c0_12, %c0_13] : memref<32x16xf32, #tpu.memory_space<vmem>>, vector<32x16xf32>
    %cst_14 = arith.constant dense<0.000000e+00> : vector<8x16xf32>
    %16 = tpu.matmul %14, %15, %cst_14 {dimension_numbers = #tpu.dot_dimension_numbers<[1], [0], [0], [1], [0, 0, 1, 1], [], []>} : vector<8x32xf32>, vector<32x16xf32>, vector<8x16xf32> -> vector<8x16xf32>
    %c0_15 = arith.constant 0 : index
    %c0_16 = arith.constant 0 : index
    %17 = vector.load %arg7[%c0_15, %c0_16] : memref<1x16xf32, #tpu.memory_space<vmem>>, vector<1x16xf32>
    %18 = vector.broadcast %17 : vector<1x16xf32> to vector<8x16xf32>
    %19 = arith.addf %16, %18 : vector<8x16xf32>
    %c0_17 = arith.constant 0 : index
    %c0_18 = arith.constant 0 : index
    %20 = vector.load %arg8[%c0_17, %c0_18] : memref<8x16xf32, #tpu.memory_space<vmem>>, vector<8x16xf32>
    tpu.vector_store %arg8[%c0_17, %c0_18], %19 {strides = array<i32>} : memref<8x16xf32, #tpu.memory_space<vmem>>, vector<8x16xf32>,
    return
  }
  func.func @transform_0(%arg0: i32) -> (i32, i32) {
    %c0_i32 = arith.constant 0 : i32
    %c0_i32_0 = arith.constant 0 : i32
    return %arg0, %c0_i32 : i32, i32
  }
  func.func @transform_1(%arg0: i32) -> (i32, i32) {
    %c0_i32 = arith.constant 0 : i32
    %c0_i32_0 = arith.constant 0 : i32
    %c0_i32_1 = arith.constant 0 : i32
    return %c0_i32, %c0_i32_0 : i32, i32
  }
  func.func @transform_2(%arg0: i32) -> (i32, i32) {
    %c0_i32 = arith.constant 0 : i32
    %c0_i32_0 = arith.constant 0 : i32
    %c0_i32_1 = arith.constant 0 : i32
    return %c0_i32, %c0_i32_0 : i32, i32
  }
  func.func @transform_3(%arg0: i32) -> (i32, i32) {
    %c0_i32 = arith.constant 0 : i32
    %c0_i32_0 = arith.constant 0 : i32
    %c0_i32_1 = arith.constant 0 : i32
    return %c0_i32, %c0_i32_0 : i32, i32
  }
  func.func @transform_4(%arg0: i32) -> (i32, i32) {
    %c0_i32 = arith.constant 0 : i32
    %c0_i32_0 = arith.constant 0 : i32
    %c0_i32_1 = arith.constant 0 : i32
    return %c0_i32, %c0_i32_0 : i32, i32
  }
  func.func @transform_5(%arg0: i32) -> (i32, i32) {
    %c0_i32 = arith.constant 0 : i32
    %c0_i32_0 = arith.constant 0 : i32
    %c0_i32_1 = arith.constant 0 : i32
    return %c0_i32, %c0_i32_0 : i32, i32
  }
  func.func @transform_6(%arg0: i32) -> (i32, i32) {
    %c0_i32 = arith.constant 0 : i32
    %c0_i32_0 = arith.constant 0 : i32
    %c0_i32_1 = arith.constant 0 : i32
    return %c0_i32, %c0_i32_0 : i32, i32
  }
  func.func @transform_7(%arg0: i32) -> (i32, i32) {
    %c0_i32 = arith.constant 0 : i32
    %c0_i32_0 = arith.constant 0 : i32
    return %arg0, %c0_i32 : i32, i32
  }
}

</mosaic_0001>

<llo_original>
// kernel: tpu_custom_call.1
$region0: #{tpu_custom_call.1}
  #allocation0 [shape = 'u32[]', space=smem, size = 0x4, offset = 0x4, fixed_abs, tag = 'smem constant byte address 0x4 - core index']
  #allocation1 [shape = 'u32[144,128]{1,0:T(1,128)}', space=vmem, size = 0x12000, scoped, tag = 'internal scratch']
  %s0 = inlined_call_operand.vmem [shape: f32[8,32], index: 0, kind: input, shape index: {}]
  %s1 = inlined_call_operand.vmem [shape: f32[32,32], index: 1, kind: input, shape index: {}]
  %s2 = inlined_call_operand.vmem [shape: f32[1,32], index: 2, kind: input, shape index: {}]
  %s3 = inlined_call_operand.hbm [shape: f32[32,32], index: 3, kind: input, shape index: {}]
  %s4 = inlined_call_operand.vmem [shape: f32[1,32], index: 4, kind: input, shape index: {}]
  %s5 = inlined_call_operand.vmem [shape: f32[32,16], index: 5, kind: input, shape index: {}]
  %s6 = inlined_call_operand.vmem [shape: f32[1,16], index: 6, kind: input, shape index: {}]
  %s7 = inlined_call_operand.hbm [shape: f32[8,16], index: 7, kind: output, shape index: {}]
  %s8 = sld [smem:[#allocation0]]
  $region42: #{tpu_custom_call.1} parent=0
    _
  %s10 = ssub.s32 1, %s8
  %s11 = scalar_select 0, %s10, %s8
  $region1: #{tpu_custom_call.1} parent=0
    #allocation2 [shape = 'u8[16384]{0}', space=vmem, size = 0x4000, scoped, tag = 'input window, operand 3, single buffered']
    #allocation3 [shape = 's32[1]{0}', space=sflag, size = 0x4, scoped, tag = 'scoped memory for tpu_custom_call.1']
    #allocation4 [shape = 's32[1]{0}', space=sflag, size = 0x4, scoped, tag = 'scoped memory for tpu_custom_call.1']
    #allocation5 [shape = 'u8[4096]{0}', space=vmem, size = 0x1000, scoped, tag = 'output window, operand 0, single buffered']
    %12 = vsyncpa [#allocation3], 0
    %13 = vsyncpa [#allocation4], 0
    // Predicated region
    $region2: #{tpu_custom_call.1} parent=1 // pred_check
      _
    $region3: #{tpu_custom_call.1} parent=1 // pred_check_branch
      %15 = sbr.rel (0) target = $region5
    $region4: #{tpu_custom_call.1} parent=1 // pred_region
      _
    $region5: #{tpu_custom_call.1} parent=1 // pred_fallthru
      _
    // Predicated region
    $region6: #{tpu_custom_call.1} parent=1 // pred_check
      _
    $region7: #{tpu_custom_call.1} parent=1 // pred_check_branch
      %17 = sbr.rel (0) target = $region9
    $region8: #{tpu_custom_call.1} parent=1 // pred_region
      _
    $region9: #{tpu_custom_call.1} parent=1 // pred_fallthru
      _
    // Predicated region
    $region10: #{tpu_custom_call.1} parent=1 // pred_check
      _
    $region11: #{tpu_custom_call.1} parent=1 // pred_check_branch
      %19 = sbr.rel (0) target = $region13
    $region12: #{tpu_custom_call.1} parent=1 // pred_region
      _
    $region13: #{tpu_custom_call.1} parent=1 // pred_fallthru
      _
    // Predicated region
    $region14: #{tpu_custom_call.1} parent=1 // pred_check
      _
    $region15: #{tpu_custom_call.1} parent=1 // pred_check_branch
      %21 = sbr.rel (0) target = $region17
    $region16: #{tpu_custom_call.1} parent=1 // pred_region
      %s23 = ssub.s32 512, 512
      %24 = vsyncadd [#allocation3], %s23
      %s25 = sshll.u32 [#allocation2], 4
      %s26 = int_to_ptr.vmem [resolvable:$true] %s25
      %31 = dma.hbm_to_vmem [thread:$0]  %s3, 512, %s26, [#allocation3], 128, 128, 8
    $region17: #{tpu_custom_call.1} parent=1 // pred_fallthru
      _
    // Predicated region
    $region18: #{tpu_custom_call.1} parent=1 // pred_check
      _
    $region19: #{tpu_custom_call.1} parent=1 // pred_check_branch
      %33 = sbr.rel (0) target = $region21
    $region20: #{tpu_custom_call.1} parent=1 // pred_region
      _
    $region21: #{tpu_custom_call.1} parent=1 // pred_fallthru
      _
    // Predicated region
    $region22: #{tpu_custom_call.1} parent=1 // pred_check
      _
    $region23: #{tpu_custom_call.1} parent=1 // pred_check_branch
      %35 = sbr.rel (0) target = $region25
    $region24: #{tpu_custom_call.1} parent=1 // pred_region
      _
    $region25: #{tpu_custom_call.1} parent=1 // pred_fallthru
      _
    // Predicated region
    $region26: #{tpu_custom_call.1} parent=1 // pred_check
      _
    $region27: #{tpu_custom_call.1} parent=1 // pred_check_branch
      %37 = sbr.rel (0) target = $region29
    $region28: #{tpu_custom_call.1} parent=1 // pred_region
      _
    $region29: #{tpu_custom_call.1} parent=1 // pred_fallthru
      _
    // Predicated region
    $region30: #{tpu_custom_call.1} parent=1 // pred_check
      _
    $region31: #{tpu_custom_call.1} parent=1 // pred_check_branch
      %39 = sbr.rel (0) target = $region33
    $region32: #{tpu_custom_call.1} parent=1 // pred_region
      %40 = dma.done [#allocation3], 512
    $region33: #{tpu_custom_call.1} parent=1 // pred_fallthru
      _
    %v41 = vld [vmem:[%s0] sm:$0xff]
    %v42 = vld [vmem:[%s1] sm:$0xff]
    %v43 = vld [vmem:[%s1 + $0x8] sm:$0xff]
    %v44 = vld [vmem:[%s1 + $0x10] sm:$0xff]
    %v45 = vld [vmem:[%s1 + $0x18] sm:$0xff]
    %v46 = vld [vmem:[%s2] sm:$0x1]
    %v48 = vlaneseq
    %v49 = vshrl.u32 %v48, 7
    %v50 = vsub.s32 0, %v49
    %v51 = vrot.slane %v46, %v50
    %vm53 = vcmask 261120
    %v55 = vsel %vm53, %v41, 0
    %57 = vmatprep.subr.mxu0 0.0
    %58 = vmatpush1.msra.mxu0 %v42
    %59 = vmatprep.subr.mxu0 0.0
    %60 = vmatpush1.msra.mxu0 %v43
    %61 = vmatprep.subr.mxu0 0.0
    %62 = vmatpush1.msra.mxu0 %v44
    %63 = vmatprep.subr.mxu0 0.0
    %64 = vmatpush1.msra.mxu0 %v45
    %65 = vmatprep.subr.mxu0 0.0
    %66 = vmatpush1.msra.mxu0 0.0
    %67 = vmatprep.subr.mxu0 0.0
    %68 = vmatpush1.msra.mxu0 0.0
    %69 = vmatprep.subr.mxu0 0.0
    %70 = vmatpush1.msra.mxu0 0.0
    %71 = vmatprep.subr.mxu0 0.0
    %72 = vmatpush1.msra.mxu0 0.0
    %73 = vmatprep.subr.mxu0 0.0
    %74 = vmatpush1.msra.mxu0 0.0
    %75 = vmatprep.subr.mxu0 0.0
    %76 = vmatpush1.msra.mxu0 0.0
    %77 = vmatprep.subr.mxu0 0.0
    %78 = vmatpush1.msra.mxu0 0.0
    %79 = vmatprep.subr.mxu0 0.0
    %80 = vmatpush1.msra.mxu0 0.0
    %81 = vmatprep.subr.mxu0 0.0
    %82 = vmatpush1.msra.mxu0 0.0
    %83 = vmatprep.subr.mxu0 0.0
    %84 = vmatpush1.msra.mxu0 0.0
    %85 = vmatprep.subr.mxu0 0.0
    %86 = vmatpush1.msra.mxu0 0.0
    %87 = vmatprep.subr.mxu0 0.0
    %88 = vmatpush1.msra.mxu0 0.0
    %89 = vmatprep.subr.mxu0 0.0
    %90 = vmatpush1.msra.mxu0 0.0
    %91 = vmatprep.subr.mxu0 0.0
    %92 = vmatpush1.msra.mxu0 0.0
    %93 = vmatprep.subr.mxu0 0.0
    %94 = vmatpush1.msra.mxu0 0.0
    %95 = vmatprep.subr.mxu0 0.0
    %96 = vmatpush1.msra.mxu0 0.0
    %97 = vmatprep.subr.mxu0 0.0
    %98 = vmatpush1.msra.mxu0 0.0
    %99 = vmatprep.subr.mxu0 0.0
    %100 = vmatpush1.msra.mxu0 0.0
    %101 = vmatprep.subr.mxu0 0.0
    %102 = vmatpush1.msra.mxu0 0.0
    %103 = vmatprep.subr.mxu0 0.0
    %104 = vmatpush1.msra.mxu0 0.0
    %105 = vmatprep.subr.mxu0 0.0
    %106 = vmatpush1.msra.mxu0 0.0
    %107 = vmatprep.subr.mxu0 0.0
    %108 = vmatpush1.msra.mxu0 0.0
    %109 = vmatprep.subr.mxu0 0.0
    %110 = vmatpush1.msra.mxu0 0.0
    %111 = vmatprep.subr.mxu0 0.0
    %112 = vmatpush1.msra.mxu0 0.0
    %113 = vmatprep.subr.mxu0 0.0
    %114 = vmatpush1.msra.mxu0 0.0
    %115 = vmatprep.subr.mxu0 0.0
    %116 = vmatpush1.msra.mxu0 0.0
    %117 = vmatprep.subr.mxu0 0.0
    %118 = vmatpush1.msra.mxu0 0.0
    %119 = vmatprep.subr.mxu0 0.0
    %120 = vmatpush1.msra.mxu0 0.0
    %121 = vmatprep.mubr.f32.mxu0 0.0
    %122 = vmatmul.mubr.f32.gmra.mrb[0].mxu0 %v55
    %v123 = vpop.f32.mrb[0].mxu0
    %v124 = vadd.f32 %v51, %v123
    %v125 = vpop.f32.mrb[0].mxu0
    %126 = vdwg.mxu0
    %v127 = vmax.f32 %v124, 0.0
    %v128 = vld [vmem:[#allocation2] sm:$0xff]
    %v129 = vld [vmem:[#allocation2 + $0x8] sm:$0xff]
    %v130 = vld [vmem:[#allocation2 + $0x10] sm:$0xff]
    %v131 = vld [vmem:[#allocation2 + $0x18] sm:$0xff]
    %v132 = vld [vmem:[%s4] sm:$0x1]
    %v134 = vlaneseq
    %v135 = vshrl.u32 %v134, 7
    %v136 = vsub.s32 0, %v135
    %v137 = vrot.slane %v132, %v136
    %v140 = vsel %vm53, %v127, 0
    %142 = vmatprep.subr.mxu0 0.0
    %143 = vmatpush1.msra.mxu0 %v128
    %144 = vmatprep.subr.mxu0 0.0
    %145 = vmatpush1.msra.mxu0 %v129
    %146 = vmatprep.subr.mxu0 0.0
    %147 = vmatpush1.msra.mxu0 %v130
    %148 = vmatprep.subr.mxu0 0.0
    %149 = vmatpush1.msra.mxu0 %v131
    %150 = vmatprep.subr.mxu0 0.0
    %151 = vmatpush1.msra.mxu0 0.0
    %152 = vmatprep.subr.mxu0 0.0
    %153 = vmatpush1.msra.mxu0 0.0
    %154 = vmatprep.subr.mxu0 0.0
    %155 = vmatpush1.msra.mxu0 0.0
    %156 = vmatprep.subr.mxu0 0.0
    %157 = vmatpush1.msra.mxu0 0.0
    %158 = vmatprep.subr.mxu0 0.0
    %159 = vmatpush1.msra.mxu0 0.0
    %160 = vmatprep.subr.mxu0 0.0
    %161 = vmatpush1.msra.mxu0 0.0
    %162 = vmatprep.subr.mxu0 0.0
    %163 = vmatpush1.msra.mxu0 0.0
    %164 = vmatprep.subr.mxu0 0.0
    %165 = vmatpush1.msra.mxu0 0.0
    %166 = vmatprep.subr.mxu0 0.0
    %167 = vmatpush1.msra.mxu0 0.0
    %168 = vmatprep.subr.mxu0 0.0
    %169 = vmatpush1.msra.mxu0 0.0
    %170 = vmatprep.subr.mxu0 0.0
    %171 = vmatpush1.msra.mxu0 0.0
    %172 = vmatprep.subr.mxu0 0.0
    %173 = vmatpush1.msra.mxu0 0.0
    %174 = vmatprep.subr.mxu0 0.0
    %175 = vmatpush1.msra.mxu0 0.0
    %176 = vmatprep.subr.mxu0 0.0
    %177 = vmatpush1.msra.mxu0 0.0
    %178 = vmatprep.subr.mxu0 0.0
    %179 = vmatpush1.msra.mxu0 0.0
    %180 = vmatprep.subr.mxu0 0.0
    %181 = vmatpush1.msra.mxu0 0.0
    %182 = vmatprep.subr.mxu0 0.0
    %183 = vmatpush1.msra.mxu0 0.0
    %184 = vmatprep.subr.mxu0 0.0
    %185 = vmatpush1.msra.mxu0 0.0
    %186 = vmatprep.subr.mxu0 0.0
    %187 = vmatpush1.msra.mxu0 0.0
    %188 = vmatprep.subr.mxu0 0.0
    %189 = vmatpush1.msra.mxu0 0.0
    %190 = vmatprep.subr.mxu0 0.0
    %191 = vmatpush1.msra.mxu0 0.0
    %192 = vmatprep.subr.mxu0 0.0
    %193 = vmatpush1.msra.mxu0 0.0
    %194 = vmatprep.subr.mxu0 0.0
    %195 = vmatpush1.msra.mxu0 0.0
    %196 = vmatprep.subr.mxu0 0.0
    %197 = vmatpush1.msra.mxu0 0.0
    %198 = vmatprep.subr.mxu0 0.0
    %199 = vmatpush1.msra.mxu0 0.0
    %200 = vmatprep.subr.mxu0 0.0
    %201 = vmatpush1.msra.mxu0 0.0
    %202 = vmatprep.subr.mxu0 0.0
    %203 = vmatpush1.msra.mxu0 0.0
    %204 = vmatprep.subr.mxu0 0.0
    %205 = vmatpush1.msra.mxu0 0.0
    %206 = vmatprep.mubr.f32.mxu0 0.0
    %207 = vmatmul.mubr.f32.gmra.mrb[0].mxu0 %v140
    %v208 = vpop.f32.mrb[0].mxu0
    %v209 = vadd.f32 %v137, %v208
    %v210 = vpop.f32.mrb[0].mxu0
    %211 = vdwg.mxu0
    %v212 = vmax.f32 %v209, 0.0
    %v213 = vld [vmem:[%s5] sm:$0xff]
    %v214 = vld [vmem:[%s5 + $0x8] sm:$0xff]
    %v215 = vld [vmem:[%s5 + $0x10] sm:$0xff]
    %v216 = vld [vmem:[%s5 + $0x18] sm:$0xff]
    %v217 = vld [vmem:[%s6] sm:$0x1]
    %v219 = vlaneseq
    %v220 = vshrl.u32 %v219, 7
    %v221 = vsub.s32 0, %v220
    %v222 = vrot.slane %v217, %v221
    %v225 = vsel %vm53, %v212, 0
    %227 = vmatprep.subr.mxu0 0.0
    %228 = vmatpush1.msra.mxu0 %v213
    %229 = vmatprep.subr.mxu0 0.0
    %230 = vmatpush1.msra.mxu0 %v214
    %231 = vmatprep.subr.mxu0 0.0
    %232 = vmatpush1.msra.mxu0 %v215
    %233 = vmatprep.subr.mxu0 0.0
    %234 = vmatpush1.msra.mxu0 %v216
    %235 = vmatprep.subr.mxu0 0.0
    %236 = vmatpush1.msra.mxu0 0.0
    %237 = vmatprep.subr.mxu0 0.0
    %238 = vmatpush1.msra.mxu0 0.0
    %239 = vmatprep.subr.mxu0 0.0
    %240 = vmatpush1.msra.mxu0 0.0
    %241 = vmatprep.subr.mxu0 0.0
    %242 = vmatpush1.msra.mxu0 0.0
    %243 = vmatprep.subr.mxu0 0.0
    %244 = vmatpush1.msra.mxu0 0.0
    %245 = vmatprep.subr.mxu0 0.0
    %246 = vmatpush1.msra.mxu0 0.0
    %247 = vmatprep.subr.mxu0 0.0
    %248 = vmatpush1.msra.mxu0 0.0
    %249 = vmatprep.subr.mxu0 0.0
    %250 = vmatpush1.msra.mxu0 0.0
    %251 = vmatprep.subr.mxu0 0.0
    %252 = vmatpush1.msra.mxu0 0.0
    %253 = vmatprep.subr.mxu0 0.0
    %254 = vmatpush1.msra.mxu0 0.0
    %255 = vmatprep.subr.mxu0 0.0
    %256 = vmatpush1.msra.mxu0 0.0
    %257 = vmatprep.subr.mxu0 0.0
    %258 = vmatpush1.msra.mxu0 0.0
    %259 = vmatprep.subr.mxu0 0.0
    %260 = vmatpush1.msra.mxu0 0.0
    %261 = vmatprep.subr.mxu0 0.0
    %262 = vmatpush1.msra.mxu0 0.0
    %263 = vmatprep.subr.mxu0 0.0
    %264 = vmatpush1.msra.mxu0 0.0
    %265 = vmatprep.subr.mxu0 0.0
    %266 = vmatpush1.msra.mxu0 0.0
    %267 = vmatprep.subr.mxu0 0.0
    %268 = vmatpush1.msra.mxu0 0.0
    %269 = vmatprep.subr.mxu0 0.0
    %270 = vmatpush1.msra.mxu0 0.0
    %271 = vmatprep.subr.mxu0 0.0
    %272 = vmatpush1.msra.mxu0 0.0
    %273 = vmatprep.subr.mxu0 0.0
    %274 = vmatpush1.msra.mxu0 0.0
    %275 = vmatprep.subr.mxu0 0.0
    %276 = vmatpush1.msra.mxu0 0.0
    %277 = vmatprep.subr.mxu0 0.0
    %278 = vmatpush1.msra.mxu0 0.0
    %279 = vmatprep.subr.mxu0 0.0
    %280 = vmatpush1.msra.mxu0 0.0
    %281 = vmatprep.subr.mxu0 0.0
    %282 = vmatpush1.msra.mxu0 0.0
    %283 = vmatprep.subr.mxu0 0.0
    %284 = vmatpush1.msra.mxu0 0.0
    %285 = vmatprep.subr.mxu0 0.0
    %286 = vmatpush1.msra.mxu0 0.0
    %287 = vmatprep.subr.mxu0 0.0
    %288 = vmatpush1.msra.mxu0 0.0
    %289 = vmatprep.subr.mxu0 0.0
    %290 = vmatpush1.msra.mxu0 0.0
    %291 = vmatprep.mubr.f32.mxu0 0.0
    %292 = vmatmul.mubr.f32.gmra.mrb[0].mxu0 %v225
    %v293 = vpop.f32.mrb[0].mxu0
    %v294 = vadd.f32 %v222, %v293
    %v295 = vpop.f32.mrb[0].mxu0
    %296 = vdwg.mxu0
    %vm297 = vcmask 130048
    %298 = vst.msk [vmem:[#allocation5] sm:$0xff] %vm297, %v294
    // Predicated region
    $region34: #{tpu_custom_call.1} parent=1 // pred_check
      _
    $region35: #{tpu_custom_call.1} parent=1 // pred_check_branch
      %300 = sbr.rel (0) target = $region37
    $region36: #{tpu_custom_call.1} parent=1 // pred_region
      %s302 = ssub.s32 128, 128
      %303 = vsyncadd [#allocation4], %s302
      %s305 = sshll.u32 [#allocation5], 4
      %s306 = int_to_ptr.vmem [resolvable:$true] %s305
      %308 = dma.vmem_to_hbm [thread:$0]  %s306, 128, %s7, [#allocation4]
    $region37: #{tpu_custom_call.1} parent=1 // pred_fallthru
      _
    // Predicated region
    $region38: #{tpu_custom_call.1} parent=1 // pred_check
      _
    $region39: #{tpu_custom_call.1} parent=1 // pred_check_branch
      %310 = sbr.rel (0) target = $region41
    $region40: #{tpu_custom_call.1} parent=1 // pred_region
      %311 = dma.done [#allocation4], 128
    $region41: #{tpu_custom_call.1} parent=1 // pred_fallthru
      _
    %312 = vsyncpa [#allocation3], 1
    %313 = vsyncpa [#allocation4], 1

</llo_original>
